<compile_context>
chip_gen: v5e
topology: v5e:2x2
jax: 0.10.0
libtpu: 0.0.40
codegen_flags: <defaults>
</compile_context>

<pallas_src>
import functools
import math

import jax
import jax.numpy as jnp
from jax import lax
from jax.experimental import pallas as pl
from jax.experimental.pallas import tpu as pltpu

MASK_VALUE = -1e30  # finite large-negative sentinel (avoids -inf / NaN)


def _attend_kernel(*refs, causal, scale, has_bias, block_q, block_k,
                   num_k_chunks, seq_q, seq_k):
    if has_bias:
        q_ref, k_ref, v_ref, bias_ref, o_ref = refs
    else:
        q_ref, k_ref, v_ref, o_ref = refs
        bias_ref = None

    head_dim = q_ref.shape[-1]
    qi = pl.program_id(2)
    row0 = qi * block_q                     # first query row of this tile
    q = q_ref[0, 0]                         # (bq, D), native dtype for the MXU

    def chunk_step(k_chunk, v_chunk, bias_chunk, col0, carry):
        m_prev, l_prev, acc_prev = carry
        # q @ k^T, contracting over D directly (no k transpose), f32 accumulate.
        s = lax.dot_general(q, k_chunk, (((1,), (1,)), ((), ())),
                            preferred_element_type=jnp.float32)
        s = s * scale                                        # (bq, bk) f32
        if bias_chunk is not None:
            s = s + bias_chunk                               # (1, bk) padding bias
        if causal:
            row = row0 + lax.broadcasted_iota(jnp.int32, (block_q, block_k), 0)
            col = col0 + lax.broadcasted_iota(jnp.int32, (block_q, block_k), 1)
            s = jnp.where(col > row + (seq_k - seq_q), MASK_VALUE, s)
        m_new = jnp.maximum(m_prev, jnp.max(s, axis=-1, keepdims=True))
        alpha = jnp.exp(m_prev - m_new)
        p = jnp.exp(s - m_new)
        l_new = alpha * l_prev + jnp.sum(p, axis=-1, keepdims=True)
        acc_new = alpha * acc_prev + jnp.dot(
            p.astype(v_chunk.dtype), v_chunk, preferred_element_type=jnp.float32)
        return m_new, l_new, acc_new

    carry0 = (jnp.full((block_q, 1), -jnp.inf, jnp.float32),   # running max m
              jnp.zeros((block_q, 1), jnp.float32),            # running sum l
              jnp.zeros((block_q, head_dim), jnp.float32))     # accumulator

    if num_k_chunks == 1:
        bias0 = bias_ref[0, 0] if has_bias else None            # (1, Sk)
        _, l, acc = chunk_step(k_ref[0, 0], v_ref[0, 0], bias0, 0, carry0)
    else:
        if causal:
            # Number of kv chunks that intersect the causal region of this q tile.
            last_col = row0 + (block_q - 1) + (seq_k - seq_q)
            hi = jnp.maximum(
                jnp.minimum(last_col // block_k + 1, num_k_chunks), 0)
        else:
            hi = num_k_chunks

        def body(t, carry):
            col0 = pl.multiple_of(t * block_k, block_k)
            k_chunk = k_ref[0, 0, pl.ds(col0, block_k), :]
            v_chunk = v_ref[0, 0, pl.ds(col0, block_k), :]
            bias_chunk = (bias_ref[0, 0, :, pl.ds(col0, block_k)]
                          if has_bias else None)
            return chunk_step(k_chunk, v_chunk, bias_chunk, col0, carry)

        _, l, acc = lax.fori_loop(0, hi, body, carry0)

    l = jnp.where(l > 0.0, l, 1.0)  # rows with no attended keys -> zero output
    o_ref[0, 0] = (acc * pl.reciprocal(l)).astype(o_ref.dtype)


def _pick_block(dim, multiple, candidates):
    for c in candidates:
        if c <= dim and dim % c == 0 and c % multiple == 0:
            return c
    return dim  # full extent (always legal: equals the array dim)


def attend(q, k, v, causal=False, mask=None, block_q=None, block_k=None):
    """JAX/Pallas equivalent of Attend.forward (flash/SDPA semantics, no dropout)."""
    if k.ndim == 3:
        k = k[:, None, :, :]
    if v.ndim == 3:
        v = v[:, None, :, :]

    B, H, Sq, D = q.shape
    Hk, Sk = k.shape[1], k.shape[2]
    assert v.shape[1] == Hk and v.shape[2] == Sk and k.shape[-1] == D
    assert Hk in (1, H)
    scale = 1.0 / math.sqrt(D)
    has_bias = mask is not None

    # Query tile: sublane-aligned (8) and dividing Sq (or the full extent).
    if block_q is None:
        block_q = _pick_block(Sq, 8, (256, 128, 64, 32, 16, 8))
    if Sq % block_q != 0 or (block_q % 8 != 0 and block_q != Sq):
        block_q = Sq

    # KV chunk size for the in-kernel online-softmax loop. K/V are fully VMEM
    # resident per (b, h); chunks only bound the (bq, bk) score tile. When the
    # padding bias is chunked its lane dim is dynamically sliced, so keep chunk
    # starts 128-aligned in that case; otherwise 8-aligned (sublane).
    if block_k is None:
        block_k = _pick_block(Sk, 128 if has_bias else 8,
                              (512, 256, 128, 64, 32, 16, 8))
    if Sk % block_k != 0:
        block_k = Sk
    if block_k != Sk and (block_k % 8 != 0 or (has_bias and block_k % 128 != 0)):
        block_k = Sk
    num_k_chunks = Sk // block_k
    nq = Sq // block_q

    kv_head = (lambda h: h) if Hk == H else (lambda h: 0)

    in_specs = [
        pl.BlockSpec((1, 1, block_q, D), lambda b, h, i: (b, h, i, 0)),
        pl.BlockSpec((1, 1, Sk, D), lambda b, h, i: (b, kv_head(h), 0, 0)),
        pl.BlockSpec((1, 1, Sk, D), lambda b, h, i: (b, kv_head(h), 0, 0)),
    ]
    inputs = [q, k, v]
    if has_bias:
        # (B, Sk) bool, True = attend  ->  additive f32 bias (B, 1, 1, Sk).
        bias = jnp.where(mask, 0.0, MASK_VALUE).astype(jnp.float32)[:, None, None, :]
        in_specs.append(pl.BlockSpec((1, 1, 1, Sk), lambda b, h, i: (b, 0, 0, 0)))
        inputs.append(bias)

    kernel = functools.partial(
        _attend_kernel, causal=causal, scale=scale, has_bias=has_bias,
        block_q=block_q, block_k=block_k, num_k_chunks=num_k_chunks,
        seq_q=Sq, seq_k=Sk)

    # TODO(synk): when D < 128 the output store is lane-underfilled; packing
    # heads into the lane dim would need a different output layout.
    # TODO(synk): for very long Sk the full K/V slab per (b, h) may exceed VMEM;
    # move the kv axis back into the grid in that regime.
    return pl.pallas_call(
        kernel,
        out_shape=jax.ShapeDtypeStruct((B, H, Sq, D), q.dtype),
        grid_spec=pltpu.PrefetchScalarGridSpec(
            num_scalar_prefetch=0,
            grid=(B, H, nq),
            in_specs=in_specs,
            out_specs=pl.BlockSpec((1, 1, block_q, D),
                                   lambda b, h, i: (b, h, i, 0)),
        ),
        compiler_params=pltpu.CompilerParams(
            dimension_semantics=("parallel", "parallel", "parallel"),
        ),
    )(*inputs)


def _reference(q, k, v, causal, mask):
    # Pure-JAX reference of SDPA semantics for a sanity check.
    if k.ndim == 3:
        k = k[:, None, :, :]
    if v.ndim == 3:
        v = v[:, None, :, :]
    B, H, Sq, D = q.shape
    Sk = k.shape[2]
    if k.shape[1] == 1:
        k = jnp.broadcast_to(k, (B, H, Sk, D))
    if v.shape[1] == 1:
        v = jnp.broadcast_to(v, (B, H, Sk, D))
    scale = 1.0 / math.sqrt(D)
    s = jnp.einsum("bhid,bhjd->bhij", q.astype(jnp.float32),
                   k.astype(jnp.float32)) * scale
    if mask is not None:
        s = jnp.where(mask[:, None, None, :], s, MASK_VALUE)
    if causal:
        i = jnp.arange(Sq)[:, None]
        j = jnp.arange(Sk)[None, :]
        s = jnp.where(j > i + (Sk - Sq), MASK_VALUE, s)
    w = jax.nn.softmax(s, axis=-1)
    return jnp.einsum("bhij,bhjd->bhid", w, v.astype(jnp.float32)).astype(q.dtype)


if __name__ == "__main__":
    root = jax.random.PRNGKey(0)
    kq, kk, kv_, km, kq2, kk2, kv2, kq3, kk3, kv3, km3 = jax.random.split(root, 11)

    # Case 1: small fp32, causal + padding mask (single kv chunk).
    B, H, S, D = 2, 2, 8, 32
    q = jax.random.normal(kq, (B, H, S, D), dtype=jnp.float32)
    k = jax.random.normal(kk, (B, H, S, D), dtype=jnp.float32)
    v = jax.random.normal(kv_, (B, H, S, D), dtype=jnp.float32)
    mask = jax.random.bernoulli(km, 0.8, (B, S)).at[:, 0].set(True)
    out = jax.block_until_ready(attend(q, k, v, causal=True, mask=mask))
    ref = _reference(q, k, v, True, mask)
    assert out.shape == (B, H, S, D)
    assert jnp.allclose(out, ref, atol=2e-3, rtol=2e-3), "case 1 mismatch vs reference"

    # Case 2: multi q-tile + multi kv-chunk online softmax with causal clipping.
    B2, H2, S2, D2 = 2, 2, 256, 32
    q2 = jax.random.normal(kq2, (B2, H2, S2, D2), dtype=jnp.float32)
    k2 = jax.random.normal(kk2, (B2, H2, S2, D2), dtype=jnp.float32)
    v2 = jax.random.normal(kv2, (B2, H2, S2, D2), dtype=jnp.float32)
    out2 = jax.block_until_ready(
        attend(q2, k2, v2, causal=True, mask=None, block_q=128, block_k=128))
    ref2 = _reference(q2, k2, v2, True, None)
    assert jnp.allclose(out2, ref2, atol=2e-3, rtol=2e-3), "case 2 mismatch vs reference"

    # Case 3: cross-attention (Sq != Sk), padding mask chunked over kv, non-causal.
    B3, H3, Sq3, Sk3, D3 = 2, 2, 64, 256, 32
    q3 = jax.random.normal(kq3, (B3, H3, Sq3, D3), dtype=jnp.float32)
    k3 = jax.random.normal(kk3, (B3, H3, Sk3, D3), dtype=jnp.float32)
    v3 = jax.random.normal(kv3, (B3, H3, Sk3, D3), dtype=jnp.float32)
    mask3 = jax.random.bernoulli(km3, 0.7, (B3, Sk3)).at[:, 0].set(True)
    out3 = jax.block_until_ready(
        attend(q3, k3, v3, causal=False, mask=mask3, block_k=128))
    ref3 = _reference(q3, k3, v3, False, mask3)
    assert jnp.allclose(out3, ref3, atol=2e-3, rtol=2e-3), "case 3 mismatch vs reference"

    # TODO(synk): dropout in Attend.attn (self.dropout is undefined in the torch
    # module) is omitted; the flash/SDPA path has no dropout either.
    print("KERNEL_OK")
</pallas_src>

<mosaic_0001>
module attributes {stable_mosaic.version = 11 : i64} {
  func.func @_attend_kernel(%arg0: i32, %arg1: i32, %arg2: i32, %arg3: memref<1x1x8x32xf32, #tpu.memory_space<vmem>>, %arg4: memref<1x1x8x32xf32, #tpu.memory_space<vmem>>, %arg5: memref<1x1x8x32xf32, #tpu.memory_space<vmem>>, %arg6: memref<1x1x1x8xf32, #tpu.memory_space<vmem>>, %arg7: memref<1x1x8x32xf32, #tpu.memory_space<vmem>>) attributes {dimension_semantics = [#tpu.dimension_semantics<parallel>, #tpu.dimension_semantics<parallel>, #tpu.dimension_semantics<parallel>], iteration_bounds = array<i64: 2, 2, 1>, scalar_prefetch = 0 : i64, scratch_operands = 0 : i64, tpu.core_type = #tpu.core_type<tc>, window_params = [{transform_indices = @transform_0, window_bounds = array<i64: 1, 1, 8, 32>}, {transform_indices = @transform_1, window_bounds = array<i64: 1, 1, 8, 32>}, {transform_indices = @transform_2, window_bounds = array<i64: 1, 1, 8, 32>}, {transform_indices = @transform_3, window_bounds = array<i64: 1, 1, 1, 8>}, {transform_indices = @transform_4, window_bounds = array<i64: 1, 1, 8, 32>}]} {
    %c8_i32 = arith.constant 8 : i32
    %0 = arith.muli %arg2, %c8_i32 : i32
    %c0 = arith.constant 0 : index
    %c0_0 = arith.constant 0 : index
    %c0_1 = arith.constant 0 : index
    %c0_2 = arith.constant 0 : index
    %1 = vector.load %arg3[%c0, %c0_0, %c0_1, %c0_2] : memref<1x1x8x32xf32, #tpu.memory_space<vmem>>, vector<1x1x8x32xf32>
    %2 = vector.shape_cast %1 : vector<1x1x8x32xf32> to vector<8x32xf32>
    %cst = arith.constant 0xFF800000 : f32
    %3 = vector.broadcast %cst : f32 to vector<8x1xf32>
    %cst_3 = arith.constant 0.000000e+00 : f32
    %4 = vector.broadcast %cst_3 : f32 to vector<8x1xf32>
    %cst_4 = arith.constant 0.000000e+00 : f32
    %5 = vector.broadcast %cst_4 : f32 to vector<8x32xf32>
    %c0_5 = arith.constant 0 : index
    %c0_6 = arith.constant 0 : index
    %c0_7 = arith.constant 0 : index
    %c0_8 = arith.constant 0 : index
    %6 = vector.load %arg6[%c0_5, %c0_6, %c0_7, %c0_8] : memref<1x1x1x8xf32, #tpu.memory_space<vmem>>, vector<1x1x1x8xf32>
    %7 = vector.shape_cast %6 : vector<1x1x1x8xf32> to vector<1x8xf32>
    %c0_9 = arith.constant 0 : index
    %c0_10 = arith.constant 0 : index
    %c0_11 = arith.constant 0 : index
    %c0_12 = arith.constant 0 : index
    %8 = vector.load %arg4[%c0_9, %c0_10, %c0_11, %c0_12] : memref<1x1x8x32xf32, #tpu.memory_space<vmem>>, vector<1x1x8x32xf32>
    %9 = vector.shape_cast %8 : vector<1x1x8x32xf32> to vector<8x32xf32>
    %c0_13 = arith.constant 0 : index
    %c0_14 = arith.constant 0 : index
    %c0_15 = arith.constant 0 : index
    %c0_16 = arith.constant 0 : index
    %10 = vector.load %arg5[%c0_13, %c0_14, %c0_15, %c0_16] : memref<1x1x8x32xf32, #tpu.memory_space<vmem>>, vector<1x1x8x32xf32>
    %11 = vector.shape_cast %10 : vector<1x1x8x32xf32> to vector<8x32xf32>
    %cst_17 = arith.constant dense<0.000000e+00> : vector<8x8xf32>
    %12 = tpu.matmul %2, %9, %cst_17 {dimension_numbers = #tpu.dot_dimension_numbers<[1], [1], [0], [0], [0, 0, 1, 0], [], []>} : vector<8x32xf32>, vector<8x32xf32>, vector<8x8xf32> -> vector<8x8xf32>
    %cst_18 = arith.constant 0.176776692 : f32
    %13 = vector.broadcast %cst_18 : f32 to vector<8x8xf32>
    %14 = arith.mulf %12, %13 : vector<8x8xf32>
    %15 = vector.broadcast %7 : vector<1x8xf32> to vector<8x8xf32>
    %16 = arith.addf %14, %15 : vector<8x8xf32>
    %17 = tpu.iota {dimensions = array<i32: 0>} : vector<8x8xi32>
    %18 = vector.broadcast %0 : i32 to vector<8x8xi32>
    %19 = arith.addi %18, %17 : vector<8x8xi32>
    %20 = tpu.iota {dimensions = array<i32: 1>} : vector<8x8xi32>
    %c0_i32 = arith.constant 0 : i32
    %21 = vector.broadcast %c0_i32 : i32 to vector<8x8xi32>
    %22 = arith.addi %21, %20 : vector<8x8xi32>
    %c0_i32_19 = arith.constant 0 : i32
    %23 = vector.broadcast %c0_i32_19 : i32 to vector<8x8xi32>
    %24 = arith.addi %19, %23 : vector<8x8xi32>
    %25 = arith.cmpi sgt, %22, %24 : vector<8x8xi32>
    %cst_20 = arith.constant -1.000000e+30 : f32
    %26 = vector.broadcast %cst_20 : f32 to vector<8x8xf32>
    %27 = arith.select %25, %26, %16 : vector<8x8xi1>, vector<8x8xf32>
    %cst_21 = arith.constant dense<0xFF800000> : vector<8xf32>
    %28 = vector.multi_reduction <maximumf>, %27, %cst_21 [1] : vector<8x8xf32> to vector<8xf32>
    %29 = vector.shape_cast %28 : vector<8xf32> to vector<8x1xf32>
    %30 = arith.maximumf %3, %29 : vector<8x1xf32>
    %31 = arith.subf %3, %30 : vector<8x1xf32>
    %32 = math.exp %31 : vector<8x1xf32>
    %33 = vector.broadcast %30 : vector<8x1xf32> to vector<8x8xf32>
    %34 = arith.subf %27, %33 : vector<8x8xf32>
    %35 = math.exp %34 : vector<8x8xf32>
    %36 = arith.mulf %32, %4 : vector<8x1xf32>
    %cst_22 = arith.constant dense<0.000000e+00> : vector<8xf32>
    %37 = vector.multi_reduction <add>, %35, %cst_22 [1] : vector<8x8xf32> to vector<8xf32>
    %38 = vector.shape_cast %37 : vector<8xf32> to vector<8x1xf32>
    %39 = arith.addf %36, %38 : vector<8x1xf32>
    %40 = vector.broadcast %32 : vector<8x1xf32> to vector<8x32xf32>
    %41 = arith.mulf %40, %5 : vector<8x32xf32>
    %cst_23 = arith.constant dense<0.000000e+00> : vector<8x32xf32>
    %42 = tpu.matmul %35, %11, %cst_23 {dimension_numbers = #tpu.dot_dimension_numbers<[1], [0], [0], [1], [0, 0, 1, 1], [], []>} : vector<8x8xf32>, vector<8x32xf32>, vector<8x32xf32> -> vector<8x32xf32>
    %43 = arith.addf %41, %42 : vector<8x32xf32>
    %cst_24 = arith.constant 0.000000e+00 : f32
    %44 = vector.broadcast %cst_24 : f32 to vector<8x1xf32>
    %45 = arith.cmpf ogt, %39, %44 : vector<8x1xf32>
    %cst_25 = arith.constant 1.000000e+00 : f32
    %46 = vector.broadcast %cst_25 : f32 to vector<8x1xf32>
    %47 = arith.select %45, %39, %46 : vector<8x1xi1>, vector<8x1xf32>
    %48 = tpu.reciprocal %47 : vector<8x1xf32> -> vector<8x1xf32>
    %49 = vector.broadcast %48 : vector<8x1xf32> to vector<8x32xf32>
    %50 = arith.mulf %43, %49 : vector<8x32xf32>
    %c0_26 = arith.constant 0 : index
    %c0_27 = arith.constant 0 : index
    %c0_28 = arith.constant 0 : index
    %c0_29 = arith.constant 0 : index
    %51 = vector.load %arg7[%c0_26, %c0_27, %c0_28, %c0_29] : memref<1x1x8x32xf32, #tpu.memory_space<vmem>>, vector<1x1x8x32xf32>
    %52 = vector.shape_cast %51 : vector<1x1x8x32xf32> to vector<8x32xf32>
    %53 = vector.shape_cast %50 : vector<8x32xf32> to vector<1x1x8x32xf32>
    tpu.vector_store %arg7[%c0_26, %c0_27, %c0_28, %c0_29], %53 {strides = array<i32>} : memref<1x1x8x32xf32, #tpu.memory_space<vmem>>, vector<1x1x8x32xf32>,
    return
  }
  func.func @transform_0(%arg0: i32, %arg1: i32, %arg2: i32) -> (i32, i32, i32, i32) {
    %c0_i32 = arith.constant 0 : i32
    %c0_i32_0 = arith.constant 0 : i32
    return %arg0, %arg1, %arg2, %c0_i32 : i32, i32, i32, i32
  }
  func.func @transform_1(%arg0: i32, %arg1: i32, %arg2: i32) -> (i32, i32, i32, i32) {
    %c0_i32 = arith.constant 0 : i32
    %c0_i32_0 = arith.constant 0 : i32
    %c0_i32_1 = arith.constant 0 : i32
    return %arg0, %arg1, %c0_i32, %c0_i32_0 : i32, i32, i32, i32
  }
  func.func @transform_2(%arg0: i32, %arg1: i32, %arg2: i32) -> (i32, i32, i32, i32) {
    %c0_i32 = arith.constant 0 : i32
    %c0_i32_0 = arith.constant 0 : i32
    %c0_i32_1 = arith.constant 0 : i32
    return %arg0, %arg1, %c0_i32, %c0_i32_0 : i32, i32, i32, i32
  }
  func.func @transform_3(%arg0: i32, %arg1: i32, %arg2: i32) -> (i32, i32, i32, i32) {
    %c0_i32 = arith.constant 0 : i32
    %c0_i32_0 = arith.constant 0 : i32
    %c0_i32_1 = arith.constant 0 : i32
    %c0_i32_2 = arith.constant 0 : i32
    return %arg0, %c0_i32, %c0_i32_0, %c0_i32_1 : i32, i32, i32, i32
  }
  func.func @transform_4(%arg0: i32, %arg1: i32, %arg2: i32) -> (i32, i32, i32, i32) {
    %c0_i32 = arith.constant 0 : i32
    %c0_i32_0 = arith.constant 0 : i32
    return %arg0, %arg1, %arg2, %c0_i32 : i32, i32, i32, i32
  }
}

</mosaic_0001>

<llo_original>
// kernel: tpu_custom_call.1
$region0: #{tpu_custom_call.1}
  #allocation0 [shape = 'u32[]', space=smem, size = 0x4, offset = 0x4, fixed_abs, tag = 'smem constant byte address 0x4 - core index']
  #allocation1 [shape = 'u32[72,128]{1,0:T(1,128)}', space=vmem, size = 0x9000, scoped, tag = 'internal scratch']
  %s0 = inlined_call_operand.hbm [shape: f32[2,2,8,32], index: 0, kind: input, shape index: {}]
  %s1 = inlined_call_operand.hbm [shape: f32[2,2,8,32], index: 1, kind: input, shape index: {}]
  %s2 = inlined_call_operand.hbm [shape: f32[2,2,8,32], index: 2, kind: input, shape index: {}]
  %s3 = inlined_call_operand.vmem [shape: f32[2,1,1,8], index: 3, kind: input, shape index: {}]
  %s4 = inlined_call_operand.hbm [shape: f32[2,2,8,32], index: 4, kind: output, shape index: {}]
  %s5 = sld [smem:[#allocation0]]
  $region61: #{tpu_custom_call.1} parent=0
    _
  %s7 = ssub.s32 1, %s5
  %s8 = scalar_select 0, %s7, %s5
  $region1: #{tpu_custom_call.1} parent=0
    #allocation2 [shape = 'u8[8192]{0}', space=vmem, size = 0x2000, scoped, tag = 'input window, operand 0']
    #allocation3 [shape = 's32[2]{0}', space=sflag, size = 0x8, scoped, tag = 'scoped memory for tpu_custom_call.1']
    #allocation4 [shape = 's32[2]{0}', space=sflag, size = 0x8, scoped, tag = 'scoped memory for tpu_custom_call.1']
    #allocation5 [shape = 'u8[8192]{0}', space=vmem, size = 0x2000, scoped, tag = 'input window, operand 1']
    #allocation6 [shape = 's32[2]{0}', space=sflag, size = 0x8, scoped, tag = 'scoped memory for tpu_custom_call.1']
    #allocation7 [shape = 'u8[8192]{0}', space=vmem, size = 0x2000, scoped, tag = 'input window, operand 2']
    #allocation8 [shape = 'u8[8192]{0}', space=vmem, size = 0x2000, scoped, tag = 'output window, operand 0']
    %9 = vsyncpa [#allocation3], 0
    %s10 = scalar_lea.sflag [#allocation3], 1
    %11 = vsyncpa %s10, 0
    %12 = vsyncpa [#allocation6], 0
    %s13 = scalar_lea.sflag [#allocation6], 1
    %14 = vsyncpa %s13, 0
    %15 = vsyncpa [#allocation4], 0
    %s16 = scalar_lea.sflag [#allocation4], 1
    %17 = vsyncpa %s16, 0
    loop: start=0, step=1, limit=6
    $region2: #{tpu_custom_call.1} parent=1 // loop_pre_header
      _
    $region3: #{tpu_custom_call.1} parent=1 // loop_header
      %s19 = sphi 0, %s23
      %p20 = scmp.ge.s32.totalorder %s19, 6
      %s26 = sphi 0, %s45
      %s27 = sphi 0, %s41
      %s28 = sphi 0, %s37
      %s29 = sphi 0, %s26
      %s30 = sphi 0, %s27
      %s31 = sphi 0, %s28
      %s32 = sphi 0, %s29
      %s33 = sphi 0, %s30
      %s34 = sphi 0, %s31
      %s52 = sphi 0, %s54
      %s55 = sphi 0, %s52
      %s56 = sphi 0, %s55
      %s72 = sphi 0, %s56
      %s80 = sphi 0, %s82
      %s83 = sphi 0, %s80
      %s84 = sphi 0, %s83
      %s100 = sphi 0, %s84
      %s108 = sphi 0, %s110
      %s111 = sphi 0, %s108
      %s112 = sphi 0, %s111
      %s128 = sphi 0, %s112
      %s134 = sphi 0, %s136
      %s137 = sphi 0, %s134
      %s138 = sphi 0, %s137
      %s154 = sphi 0, %s138
      %s164 = sphi 0, %s166
      %s167 = sphi 0, %s164
      %s168 = sphi 0, %s167
      %s184 = sphi 0, %s168
    $region4: #{tpu_custom_call.1} parent=1 // loop_header_branch
      %22 = sbr.rel (%p20) target = $region8
    $region5: #{tpu_custom_call.1} parent=1 // loop_body
      %s24 = ssub.s32 %s19, 1
      %s25 = ssub.s32 %s19, 2
      %s35 = sadd.s32 1, %s28
      %p36 = scmp.ge.s32.totalorder %s35, 1
      %s37 = scalar_select %p36, 0, %s35
      %s38 = sadd.s32 1, %s27
      %s39 = scalar_select %p36, %s38, %s27
      %p40 = scmp.ge.s32.totalorder %s39, 2
      %s41 = scalar_select %p40, 0, %s39
      %s42 = sadd.s32 1, %s26
      %s43 = scalar_select %p40, %s42, %s26
      %p44 = scmp.ge.s32.totalorder %s43, 2
      %s45 = scalar_select %p44, 0, %s43
      %s46 = ssub.s32 %s26, %s45
      %s47 = ssub.s32 %s27, %s41
      %s48 = sor.u32 %s46, %s47
      %s49 = ssub.s32 %s28, %s37
      %s50 = sor.u32 %s48, %s49
      %p51 = scmp.eq.s32.totalorder %s50, 0
      %s53 = sadd.s32 %s52, 1
      %s54 = scalar_select %p51, %s52, %s53
      %p57 = pneg %p51
      %p58 = scmp.eq.s32.totalorder %s19, 3
      %p59 = por %p57, %p58
      %p60 = scmp.ne.s32.totalorder %s52, %s55
      %p61 = scmp.eq.s32.totalorder %s19, 0
      %p62 = por %p60, %p61
      %p63 = scmp.ne.s32.totalorder %s52, %s55
      %p64 = scmp.eq.s32.totalorder %s24, 3
      %p65 = por %p63, %p64
      %p66 = scmp.ne.s32.totalorder %s55, %s56
      %p67 = scmp.eq.s32.totalorder %s24, 0
      %p68 = por %p66, %p67
      %p69 = scmp.ne.s32.totalorder %s55, %s56
      %p70 = scmp.eq.s32.totalorder %s25, 3
      %p71 = por %p69, %p70
      %p73 = scmp.ne.s32.totalorder %s56, %s72
      %p74 = scmp.eq.s32.totalorder %s25, 0
      %p75 = por %p73, %p74
      %s76 = ssub.s32 %s26, %s45
      %s77 = ssub.s32 %s27, %s41
      %s78 = sor.u32 %s76, %s77
      %p79 = scmp.eq.s32.totalorder %s78, 0
      %s81 = sadd.s32 %s80, 1
      %s82 = scalar_select %p79, %s80, %s81
      %p85 = pneg %p79
      %p86 = scmp.eq.s32.totalorder %s19, 3
      %p87 = por %p85, %p86
      %p88 = scmp.ne.s32.totalorder %s80, %s83
      %p89 = scmp.eq.s32.totalorder %s19, 0
      %p90 = por %p88, %p89
      %p91 = scmp.ne.s32.totalorder %s80, %s83
      %p92 = scmp.eq.s32.totalorder %s24, 3
      %p93 = por %p91, %p92
      %p94 = scmp.ne.s32.totalorder %s83, %s84
      %p95 = scmp.eq.s32.totalorder %s24, 0
      %p96 = por %p94, %p95
      %p97 = scmp.ne.s32.totalorder %s83, %s84
      %p98 = scmp.eq.s32.totalorder %s25, 3
      %p99 = por %p97, %p98
      %p101 = scmp.ne.s32.totalorder %s84, %s100
      %p102 = scmp.eq.s32.totalorder %s25, 0
      %p103 = por %p101, %p102
      %s104 = ssub.s32 %s26, %s45
      %s105 = ssub.s32 %s27, %s41
      %s106 = sor.u32 %s104, %s105
      %p107 = scmp.eq.s32.totalorder %s106, 0
      %s109 = sadd.s32 %s108, 1
      %s110 = scalar_select %p107, %s108, %s109
      %p113 = pneg %p107
      %p114 = scmp.eq.s32.totalorder %s19, 3
      %p115 = por %p113, %p114
      %p116 = scmp.ne.s32.totalorder %s108, %s111
      %p117 = scmp.eq.s32.totalorder %s19, 0
      %p118 = por %p116, %p117
      %p119 = scmp.ne.s32.totalorder %s108, %s111
      %p120 = scmp.eq.s32.totalorder %s24, 3
      %p121 = por %p119, %p120
      %p122 = scmp.ne.s32.totalorder %s111, %s112
      %p123 = scmp.eq.s32.totalorder %s24, 0
      %p124 = por %p122, %p123
      %p125 = scmp.ne.s32.totalorder %s111, %s112
      %p126 = scmp.eq.s32.totalorder %s25, 3
      %p127 = por %p125, %p126
      %p129 = scmp.ne.s32.totalorder %s112, %s128
      %p130 = scmp.eq.s32.totalorder %s25, 0
      %p131 = por %p129, %p130
      %s132 = ssub.s32 %s26, %s45
      %p133 = scmp.eq.s32.totalorder %s132, 0
      %s135 = sadd.s32 %s134, 1
      %s136 = scalar_select %p133, %s134, %s135
      %p139 = pneg %p133
      %p140 = scmp.eq.s32.totalorder %s19, 3
      %p141 = por %p139, %p140
      %p142 = scmp.ne.s32.totalorder %s134, %s137
      %p143 = scmp.eq.s32.totalorder %s19, 0
      %p144 = por %p142, %p143
      %p145 = scmp.ne.s32.totalorder %s134, %s137
      %p146 = scmp.eq.s32.totalorder %s24, 3
      %p147 = por %p145, %p146
      %p148 = scmp.ne.s32.totalorder %s137, %s138
      %p149 = scmp.eq.s32.totalorder %s24, 0
      %p150 = por %p148, %p149
      %p151 = scmp.ne.s32.totalorder %s137, %s138
      %p152 = scmp.eq.s32.totalorder %s25, 3
      %p153 = por %p151, %p152
      %p155 = scmp.ne.s32.totalorder %s138, %s154
      %p156 = scmp.eq.s32.totalorder %s25, 0
      %p157 = por %p155, %p156
      %s158 = ssub.s32 %s26, %s45
      %s159 = ssub.s32 %s27, %s41
      %s160 = sor.u32 %s158, %s159
      %s161 = ssub.s32 %s28, %s37
      %s162 = sor.u32 %s160, %s161
      %p163 = scmp.eq.s32.totalorder %s162, 0
      %s165 = sadd.s32 %s164, 1
      %s166 = scalar_select %p163, %s164, %s165
      %p169 = pneg %p163
      %p170 = scmp.eq.s32.totalorder %s19, 3
      %p171 = por %p169, %p170
      %p172 = scmp.ne.s32.totalorder %s164, %s167
      %p173 = scmp.eq.s32.totalorder %s19, 0
      %p174 = por %p172, %p173
      %p175 = scmp.ne.s32.totalorder %s164, %s167
      %p176 = scmp.eq.s32.totalorder %s24, 3
      %p177 = por %p175, %p176
      %p178 = scmp.ne.s32.totalorder %s167, %s168
      %p179 = scmp.eq.s32.totalorder %s24, 0
      %p180 = por %p178, %p179
      %p181 = scmp.ne.s32.totalorder %s167, %s168
      %p182 = scmp.eq.s32.totalorder %s25, 3
      %p183 = por %p181, %p182
      %p185 = scmp.ne.s32.totalorder %s168, %s184
      %p186 = scmp.eq.s32.totalorder %s25, 0
      %p187 = por %p185, %p186
      %p188 = scmp.le.s32.totalorder 1, %s19
      %p189 = scmp.lt.s32.totalorder %s19, 5
      %p190 = pnand %p188, %p189
      %p191 = pneg %p190
      // Predicated region
      $region9: #{tpu_custom_call.1} parent=5 // pred_check
        _
      $region10: #{tpu_custom_call.1} parent=5 // pred_check_branch
        %193 = sbr.rel (%p190) target = $region12
      $region11: #{tpu_custom_call.1} parent=5 // pred_region
        %s194 = ssub.s32 %s19, 1
      $region12: #{tpu_custom_call.1} parent=5 // pred_fallthru
        _
      %p195 = scmp.lt.s32.totalorder %s19, 4
      // Predicated region
      $region13: #{tpu_custom_call.1} parent=5 // pred_check
        %p196 = pneg %p195
      $region14: #{tpu_custom_call.1} parent=5 // pred_check_branch
        %198 = sbr.rel (%p196) target = $region16
      $region15: #{tpu_custom_call.1} parent=5 // pred_region
        // Predicated region
        $region17: #{tpu_custom_call.1} parent=15 // pred_check
          %p199 = pneg %p62
        $region18: #{tpu_custom_call.1} parent=15 // pred_check_branch
          %201 = sbr.rel (%p199) target = $region20
        $region19: #{tpu_custom_call.1} parent=15 // pred_region
          %s202 = sand.u32 %s52, 1
          %s203 = scalar_lea.sflag [#allocation3], %s202
          %s204 = sand.u32 %s52, 1
          %s205 = smul.addr %s204, 8
          %s206 = scalar_lea.vmem [#allocation2], %s205
          %208 = vsyncadd %s203, 0
          %s209 = sadd.s32 %s28, %s27
          %s210 = smul.addr %s26, 2
          %s211 = sadd.s32 %s209, %s210
          %s212 = smul.addr %s211, 8
          %s213 = scalar_lea.hbm %s0, %s212
          %s215 = sshll.u32 %s213, 4
          %s216 = int_to_ptr.hbm [resolvable:$true] %s215
          %s217 = sshll.u32 %s206, 4
          %s218 = int_to_ptr.vmem [resolvable:$true] %s217
          %220 = dma.hbm_to_vmem [thread:$0]  %s216, 128, %s218, %s203
        $region20: #{tpu_custom_call.1} parent=15 // pred_fallthru
          _
        // Predicated region
        $region21: #{tpu_custom_call.1} parent=15 // pred_check
          %p221 = pneg %p90
        $region22: #{tpu_custom_call.1} parent=15 // pred_check_branch
          %223 = sbr.rel (%p221) target = $region24
        $region23: #{tpu_custom_call.1} parent=15 // pred_region
          %s224 = sand.u32 %s19, 1
          %s225 = scalar_lea.sflag [#allocation6], %s224
          %s226 = sand.u32 %s80, 1
          %s227 = smul.addr %s226, 8
          %s228 = scalar_lea.vmem [#allocation5], %s227
          %230 = vsyncadd %s225, 0
          %s231 = smul.addr %s26, 2
          %s232 = sadd.s32 %s27, %s231
          %s233 = smul.addr %s232, 8
          %s234 = scalar_lea.hbm %s1, %s233
          %s236 = sshll.u32 %s234, 4
          %s237 = int_to_ptr.hbm [resolvable:$true] %s236
          %s238 = sshll.u32 %s228, 4
          %s239 = int_to_ptr.vmem [resolvable:$true] %s238
          %241 = dma.hbm_to_vmem [thread:$0]  %s237, 128, %s239, %s225
        $region24: #{tpu_custom_call.1} parent=15 // pred_fallthru
          _
        // Predicated region
        $region25: #{tpu_custom_call.1} parent=15 // pred_check
          %p242 = pneg %p118
        $region26: #{tpu_custom_call.1} parent=15 // pred_check_branch
          %244 = sbr.rel (%p242) target = $region28
        $region27: #{tpu_custom_call.1} parent=15 // pred_region
          %s245 = sand.u32 %s19, 1
          %s246 = scalar_lea.sflag [#allocation6], %s245
          %s247 = sand.u32 %s108, 1
          %s248 = smul.addr %s247, 8
          %s249 = scalar_lea.vmem [#allocation7], %s248
          %251 = vsyncadd %s246, 0
          %s252 = smul.addr %s26, 2
          %s253 = sadd.s32 %s27, %s252
          %s254 = smul.addr %s253, 8
          %s255 = scalar_lea.hbm %s2, %s254
          %s257 = sshll.u32 %s255, 4
          %s258 = int_to_ptr.hbm [resolvable:$true] %s257
          %s259 = sshll.u32 %s249, 4
          %s260 = int_to_ptr.vmem [resolvable:$true] %s259
          %262 = dma.hbm_to_vmem [thread:$0]  %s258, 128, %s260, %s246
        $region28: #{tpu_custom_call.1} parent=15 // pred_fallthru
          _
        // Predicated region
        $region29: #{tpu_custom_call.1} parent=15 // pred_check
          %p263 = pneg %p144
        $region30: #{tpu_custom_call.1} parent=15 // pred_check_branch
          %265 = sbr.rel (%p263) target = $region32
        $region31: #{tpu_custom_call.1} parent=15 // pred_region
          %p266 = scmp.lt.s32.totalorder %s26, 1
          %s267 = scalar_select %p266, %s26, 1
          %s268 = scalar_lea.vmem %s3, %s267
        $region32: #{tpu_custom_call.1} parent=15 // pred_fallthru
          _
      $region16: #{tpu_custom_call.1} parent=5 // pred_fallthru
        _
      %p269 = scmp.le.s32.totalorder 1, %s19
      %p270 = scmp.lt.s32.totalorder %s19, 5
      %p271 = pnand %p269, %p270
      %p272 = pneg %p271
      // Predicated region
      $region33: #{tpu_custom_call.1} parent=5 // pred_check
        _
      $region34: #{tpu_custom_call.1} parent=5 // pred_check_branch
        %274 = sbr.rel (%p271) target = $region36
      $region35: #{tpu_custom_call.1} parent=5 // pred_region
        %s275 = ssub.s32 %s19, 1
        %s276 = sand.u32 %s55, 1
        %s277 = scalar_lea.sflag [#allocation3], %s276
        %s278 = sand.u32 %s55, 1
        %s279 = smul.addr %s278, 8
        %s280 = scalar_lea.vmem [#allocation2], %s279
        // Predicated region
        $region37: #{tpu_custom_call.1} parent=35 // pred_check
          %p281 = pneg %p68
        $region38: #{tpu_custom_call.1} parent=35 // pred_check_branch
          %283 = sbr.rel (%p281) target = $region40
        $region39: #{tpu_custom_call.1} parent=35 // pred_region
          %285 = dma.done %s277, 128
        $region40: #{tpu_custom_call.1} parent=35 // pred_fallthru
          _
        %s286 = sand.u32 %s24, 1
        %s287 = scalar_lea.sflag [#allocation6], %s286
        %s288 = sand.u32 %s83, 1
        %s289 = smul.addr %s288, 8
        %s290 = scalar_lea.vmem [#allocation5], %s289
        // Predicated region
        $region41: #{tpu_custom_call.1} parent=35 // pred_check
          %p291 = pneg %p96
        $region42: #{tpu_custom_call.1} parent=35 // pred_check_branch
          %293 = sbr.rel (%p291) target = $region44
        $region43: #{tpu_custom_call.1} parent=35 // pred_region
          %295 = dma.done %s287, 128
        $region44: #{tpu_custom_call.1} parent=35 // pred_fallthru
          _
        %s296 = sand.u32 %s24, 1
        %s297 = scalar_lea.sflag [#allocation6], %s296
        %s298 = sand.u32 %s111, 1
        %s299 = smul.addr %s298, 8
        %s300 = scalar_lea.vmem [#allocation7], %s299
        // Predicated region
        $region45: #{tpu_custom_call.1} parent=35 // pred_check
          %p301 = pneg %p124
        $region46: #{tpu_custom_call.1} parent=35 // pred_check_branch
          %303 = sbr.rel (%p301) target = $region48
        $region47: #{tpu_custom_call.1} parent=35 // pred_region
          %305 = dma.done %s297, 128
        $region48: #{tpu_custom_call.1} parent=35 // pred_fallthru
          _
        %s306 = sand.u32 %s55, 1
        %s307 = scalar_lea.sflag [#allocation3], %s306
        %s308 = sand.u32 %s55, 1
        %s309 = smul.addr %s308, 8
        %s310 = scalar_lea.vmem [#allocation2], %s309
        %p311 = pneg %p68
        %p312 = pneg %p65
        %s313 = sand.u32 %s24, 1
        %s314 = scalar_lea.sflag [#allocation6], %s313
        %s315 = sand.u32 %s83, 1
        %s316 = smul.addr %s315, 8
        %s317 = scalar_lea.vmem [#allocation5], %s316
        %p318 = pneg %p96
        %p319 = pneg %p93
        %s320 = sand.u32 %s24, 1
        %s321 = scalar_lea.sflag [#allocation6], %s320
        %s322 = sand.u32 %s111, 1
        %s323 = smul.addr %s322, 8
        %s324 = scalar_lea.vmem [#allocation7], %s323
        %p325 = pneg %p124
        %p326 = pneg %p121
        %p327 = scmp.lt.s32.totalorder %s29, 1
        %s328 = scalar_select %p327, %s29, 1
        %s329 = scalar_lea.vmem %s3, %s328
        %p330 = pneg %p150
        %p331 = pneg %p147
        %p332 = pneg %p180
        %p333 = pneg %p177
        %s334 = sand.u32 %s167, 1
        %s335 = scalar_lea.sflag [#allocation4], %s334
        %s336 = sand.u32 %s167, 1
        %s337 = smul.addr %s336, 8
        %s338 = scalar_lea.vmem [#allocation8], %s337
        %p339 = scmp.lt.s32.totalorder %s29, 1
        %s340 = scalar_select %p339, %s29, 1
        %s341 = scalar_lea.vmem %s3, %s340
        %s342 = smul.u32 %s31, 8
        %v343 = vld [vmem:[%s280] sm:$0xff]
        %v344 = vld [vmem:[%s341] sm:$0x1]
        %v345 = vld [vmem:[%s290] sm:$0xff]
        %v346 = vld [vmem:[%s300] sm:$0xff]
        %vm347 = vcmask 261120
        %v349 = vsel %vm347, %v343, 0
        %v352 = vsel %vm347, %v345, 0
        %354 = vmatpush.xpose.msra.mxu0 0.0
        %355 = vmatpush.xpose.msra.mxu0 0.0
        %356 = vmatpush.xpose.msra.mxu0 0.0
        %357 = vmatpush.xpose.msra.mxu0 0.0
        %358 = vmatpush.xpose.msra.mxu0 0.0
        %359 = vmatpush.xpose.msra.mxu0 0.0
        %360 = vmatpush.xpose.msra.mxu0 0.0
        %361 = vmatpush.xpose.msra.mxu0 0.0
        %362 = vmatpush.xpose.msra.mxu0 0.0
        %363 = vmatpush.xpose.msra.mxu0 0.0
        %364 = vmatpush.xpose.msra.mxu0 0.0
        %365 = vmatpush.xpose.msra.mxu0 0.0
        %366 = vmatpush.xpose.msra.mxu0 0.0
        %367 = vmatpush.xpose.msra.mxu0 0.0
        %368 = vmatpush.xpose.msra.mxu0 0.0
        %369 = vmatpush.xpose.msra.mxu0 %v352
        %370 = vmatmul.f32.gmra.mxu0 %v349
        %v371 = vpop.f32.mrf.mxu0
        %v372 = vadd.f32 0.0, %v371
        %373 = vdwg.mxu0
        %v374 = vmul.f32 %v372, 0.17677669
        %v376 = vperm.slane %v344, 0
        %v378 = vadd.f32 %v374, %v376
        %v379 = vlaneseq
        %v380 = vshrl.u32 %v379, 7
        %v381 = vstv %s342
        %v382 = vadd.s32 %v381, %v380
        %v383 = vlaneseq
        %v384 = vand.u32 %v383, 127
        %vm385 = vcmp.gt.s32.totalorder %v384, %v382
        %v386 = vsel %vm385, -1e+30, %v378
        %vm387 = vcmask 64512
        %v388 = vsel %vm387, %v386, -inf
        %389 = vmax.xlane.f32.xlu0 %v388
        %v390 = vpop.xlane.xlu0 %389
        %v391 = vsub.f32 -inf, %v390
        %v392 = vmul.f32 %v391, 1.442695
        %v393 = vpow.pop %v392
        %v394 = vsub.f32 %v386, %v390
        %v395 = vmul.f32 %v394, 1.442695
        %v396 = vpow.pop %v395
        %v397 = vmul.f32 %v393, 0.0
        %v398 = vsel %vm387, %v396, 0.0
        %399 = vadd.xlane.f32.xlu0 %v398
        %v400 = vpop.xlane.xlu0 %399
        %v401 = vadd.f32 %v397, %v400
        %v403 = vsel %vm387, %v396, 0
        %405 = vmatpush.msra.mxu0 0.0
        %406 = vmatpush.msra.mxu0 0.0
        %407 = vmatpush.msra.mxu0 0.0
        %408 = vmatpush.msra.mxu0 0.0
        %409 = vmatpush.msra.mxu0 0.0
        %410 = vmatpush.msra.mxu0 0.0
        %411 = vmatpush.msra.mxu0 0.0
        %412 = vmatpush.msra.mxu0 0.0
        %413 = vmatpush.msra.mxu0 0.0
        %414 = vmatpush.msra.mxu0 0.0
        %415 = vmatpush.msra.mxu0 0.0
        %416 = vmatpush.msra.mxu0 0.0
        %417 = vmatpush.msra.mxu0 0.0
        %418 = vmatpush.msra.mxu0 0.0
        %419 = vmatpush.msra.mxu0 0.0
        %420 = vmatpush.msra.mxu0 %v346
        %421 = vmatmul.f32.gmra.mxu0 %v403
        %v422 = vpop.f32.mrf.mxu0
        %v423 = vadd.f32 0.0, %v422
        %424 = vdwg.mxu0
        %v425 = vadd.f32 %v397, %v423
        %vm426 = vcmp.gt.f32.partialorder %v401, 0.0
        %v427 = vsel %vm426, %v401, 1.0
        %v428 = vrcp.pop %v427
        %v429 = vmul.f32 %v427, %v428
        %v430 = vsub.f32 1.0, %v429
        %v431 = vmul.f32 %v428, %v430
        %v432 = vadd.f32 %v428, %v431
        %vm433 = vweird.f32 %v427
        %vm434 = vweird.f32 %v428
        %vm435 = vmor %vm433, %vm434
        %v436 = vsel %vm435, %v428, %v432
        %v437 = vand.u32 2147483647, %v427
        %vm438 = vcmp.eq.f32.partialorder %v437, 8.507059e+37
        %v439 = vand.u32 %v427, 2147483648
        %v440 = vor.u32 1.1754944e-38, %v439
        %v441 = vsel %vm438, %v440, %v436
        %v442 = vmul.f32 %v425, %v441
        %443 = vst.msk [vmem:[%s338] sm:$0xff] %vm347, %v442
        %s444 = sand.u32 %s167, 1
        %s445 = scalar_lea.sflag [#allocation4], %s444
        %s446 = sand.u32 %s167, 1
        %s447 = smul.addr %s446, 8
        %s448 = scalar_lea.vmem [#allocation8], %s447
        // Predicated region
        $region49: #{tpu_custom_call.1} parent=35 // pred_check
          %p449 = pneg %p177
        $region50: #{tpu_custom_call.1} parent=35 // pred_check_branch
          %451 = sbr.rel (%p449) target = $region52
        $region51: #{tpu_custom_call.1} parent=35 // pred_region
          %453 = vsyncadd %s445, 0
          %s454 = sadd.s32 %s31, %s30
          %s455 = smul.addr %s29, 2
          %s456 = sadd.s32 %s454, %s455
          %s457 = smul.addr %s456, 8
          %s458 = scalar_lea.hbm %s4, %s457
          %s460 = sshll.u32 %s448, 4
          %s461 = int_to_ptr.vmem [resolvable:$true] %s460
          %s462 = sshll.u32 %s458, 4
          %s463 = int_to_ptr.hbm [resolvable:$true] %s462
          %465 = dma.vmem_to_hbm [thread:$0]  %s461, 128, %s463, %s445
        $region52: #{tpu_custom_call.1} parent=35 // pred_fallthru
          _
      $region36: #{tpu_custom_call.1} parent=5 // pred_fallthru
        _
      %p466 = scmp.le.s32.totalorder 2, %s19
      // Predicated region
      $region53: #{tpu_custom_call.1} parent=5 // pred_check
        %p467 = pneg %p466
      $region54: #{tpu_custom_call.1} parent=5 // pred_check_branch
        %469 = sbr.rel (%p467) target = $region56
      $region55: #{tpu_custom_call.1} parent=5 // pred_region
        %s470 = ssub.s32 %s19, 2
        // Predicated region
        $region57: #{tpu_custom_call.1} parent=55 // pred_check
          %p471 = pneg %p183
        $region58: #{tpu_custom_call.1} parent=55 // pred_check_branch
          %473 = sbr.rel (%p471) target = $region60
        $region59: #{tpu_custom_call.1} parent=55 // pred_region
          %s474 = sand.u32 %s168, 1
          %s475 = scalar_lea.sflag [#allocation4], %s474
          %s476 = sand.u32 %s168, 1
          %s477 = smul.addr %s476, 8
          %s478 = scalar_lea.vmem [#allocation8], %s477
          %480 = dma.done %s475, 128
        $region60: #{tpu_custom_call.1} parent=55 // pred_fallthru
          _
      $region56: #{tpu_custom_call.1} parent=5 // pred_fallthru
        _
    $region6: #{tpu_custom_call.1} parent=1 // loop_footer
      %s23 = sadd.s32 1, %s19
    $region7: #{tpu_custom_call.1} parent=1 // loop_footer_branch
      %18 = sbr.rel target = $region3
    $region8: #{tpu_custom_call.1} parent=1 // loop_exit
      _
    %481 = vsyncpa [#allocation3], 1
    %s482 = scalar_lea.sflag [#allocation3], 1
    %483 = vsyncpa %s482, 1
    %484 = vsyncpa [#allocation6], 1
    %s485 = scalar_lea.sflag [#allocation6], 1
    %486 = vsyncpa %s485, 1
    %487 = vsyncpa [#allocation4], 1
    %s488 = scalar_lea.sflag [#allocation4], 1
    %489 = vsyncpa %s488, 1

</llo_original>
